<compile_context>
chip_gen: v5e
topology: v5e:2x2
jax: 0.10.0
libtpu: 0.0.40
codegen_flags: <defaults>
</compile_context>

<pallas_src>
import jax
import jax.numpy as jnp
from jax import lax
from jax.experimental import pallas as pl
from jax.experimental.pallas import tpu as pltpu


def _flow_cell_qe_kernel(s_ref, e_ref, w_ref, b_ref,
                         ahat_n_ref, a_n_ref, loss_ref):
    d = e_ref.shape[-1]
    q = s_ref[:, :, :d]     # [BT, N, D]  sent_emb[:, 0::2, :]  (lane-aligned slice)
    a = s_ref[:, :, d:]     # [BT, N, D]  sent_emb[:, 1::2, :]
    e = e_ref[...]          # [BT, N, D]  entity_emb[:, 1::2, :]
    w = w_ref[...]          # [D, D]      nn.Linear weight, [out, in]
    bias = b_ref[...]       # [1, D]

    bt, n, _ = e.shape

    # flow_trans(entity_a) = entity_a @ W^T + b. 3-D contraction directly on
    # the MXU — no (bt*N, D) reshape round-trip (avoids a sublane repack when
    # N is not a multiple of 8).
    y = lax.dot_general(
        e, w,
        dimension_numbers=(((2,), (1,)), ((), ())),
        preferred_element_type=jnp.float32,
    )                                                        # [BT, N, D]
    a_hat = q + y + bias                                     # [BT, N, D]

    # sent_mask = sent_emb[:, ::2].sum(-1) != 0
    rowsum = jnp.sum(q, axis=-1, keepdims=True)              # [BT, N, 1]
    mask = rowsum != 0.0

    # last valid Q/A pair per batch row: index (count - 1); a fully padded row
    # wraps to N-1, matching torch's -1 indexing.
    n_valid = jnp.sum(mask.astype(jnp.int32), axis=1, keepdims=True)   # [BT,1,1]
    last_idx = jnp.where(n_valid > 0, n_valid - 1, n - 1)
    iota = lax.broadcasted_iota(jnp.int32, (bt, n, 1), 1)
    last_mask = iota == last_idx                             # [BT, N, 1]
    flow_mask = jnp.logical_and(mask, jnp.logical_not(last_mask))

    # flow_loss partial for this block: sum(((a_hat - a) * flow_mask)^2).
    fm = flow_mask.astype(jnp.float32)
    diff = (a_hat - a) * fm
    loss_ref[...] = jnp.full((1, 1, 1), jnp.sum(diff * diff), jnp.float32)

    # masked_select(last_sent_mask): one row per batch element, via a one-hot
    # weighted sum vectorised across the BT rows in this block.
    lm = last_mask.astype(jnp.float32)
    ahat_n_ref[...] = jnp.sum(a_hat * lm, axis=1)            # [BT, D]
    a_n_ref[...] = jnp.sum(a * lm, axis=1)                   # [BT, D]


def _round_up(x, m):
    return ((x + m - 1) // m) * m


def _vmem_capacity_bytes():
    try:
        return int(pltpu.get_tpu_info().vmem_capacity_bytes)
    except Exception:
        return 64 << 20          # conservative (v7x per-TC VMEM)


def _pick_block_batch(B, N, D):
    """Batch rows per grid step.

    Targets ~4 MiB of input bytes per step (the kernel is HBM-bound, so DMA
    burst size / per-step overhead — not MXU-M fill — is the objective),
    bounded by a generation-aware VMEM budget for the double-buffered inputs,
    and capped so there are >= ~4 grid steps (v7x shards the parallel batch
    axis across its 2 TensorCores). Always a multiple of 8 sublanes.
    """
    row_bytes = 3 * N * D * 4                    # fused sent (2D) + entity-A (D)
    target_rows = pl.cdiv(4 << 20, row_bytes)    # ~4 MiB of input per step
    budget = _vmem_capacity_bytes() // 2         # head-room for outputs/temps
    vmem_rows = budget // (2 * row_bytes)        # 2x for double buffering
    bt = min(target_rows, vmem_rows, 1024)
    bt = min(bt, _round_up(pl.cdiv(B, 4), 8))    # keep >= ~4 grid steps
    return max(8, (bt // 8) * 8)


def flow_cell_qe(sent_emb, entity_emb, weight, bias):
    """Pallas implementation of FlowCellQE.forward.

    sent_emb:   [B, S, D] float32 (S even: Q/A interleaved)
    entity_emb: [B, S, D] float32
    weight:     [D, D]    float32 (nn.Linear weight, [out, in])
    bias:       [D]       float32
    Returns (sent_a_hat_n [B, D], sent_a_n [B, D], flow_loss scalar).
    """
    B, S, D = sent_emb.shape
    assert S % 2 == 0, "sequence length must be even (Q/A interleaved)"
    N = S // 2

    # Pad flow_size to a lane multiple once so the zero-copy reshape/index_map
    # path is always taken. Padded lanes are exact zeros in inputs, weight and
    # bias, so mask / loss / outputs are unaffected; they are sliced off below.
    D_pad = _round_up(D, 128)
    if D_pad != D:
        dp = D_pad - D
        sent_emb = jnp.pad(sent_emb, ((0, 0), (0, 0), (0, dp)))
        entity_emb = jnp.pad(entity_emb, ((0, 0), (0, 0), (0, dp)))
        weight = jnp.pad(weight, ((0, dp), (0, dp)))
        bias = jnp.pad(bias, ((0, dp),))

    bt = _pick_block_batch(B, N, D_pad)

    # Pad the batch to a multiple of bt; padded rows are all-zero, so they
    # contribute zero loss and their output rows are sliced off below.
    G = pl.cdiv(B, bt)
    B_pad = G * bt
    if B_pad != B:
        pad = B_pad - B
        sent_emb = jnp.pad(sent_emb, ((0, pad), (0, 0), (0, 0)))
        entity_emb = jnp.pad(entity_emb, ((0, pad), (0, 0), (0, 0)))

    # Free reshape (B, S, D) -> (B, N, 2D): Q|A are the two halves of the last
    # dim. sent is fetched as ONE contiguous (bt, N, 2D) block; entity keeps
    # the half-width odd-row block selected purely by index_map (even entity
    # rows are never read).
    sent2 = sent_emb.reshape(B_pad, N, 2 * D_pad)
    ent2 = entity_emb.reshape(B_pad, N, 2 * D_pad)
    b2 = bias.reshape(1, D_pad)

    # Explicit scoped-VMEM limit so the larger blocks fit on every generation.
    sent_blk = bt * N * 2 * D_pad * 4
    ent_blk = bt * N * D_pad * 4
    out_blk = bt * D_pad * 4
    needed = (2 * (sent_blk + ent_blk)          # double-buffered inputs
              + 4 * out_blk                     # double-buffered row outputs
              + 2 * D_pad * D_pad * 4           # weight
              + (4 << 20))                      # temps / slack
    vmem_cap = _vmem_capacity_bytes()
    vmem_limit = int(min(vmem_cap * 0.9, max(32 << 20, 2 * needed)))

    cost = pl.CostEstimate(
        flops=int(2 * B_pad * N * D_pad * D_pad),
        transcendentals=0,
        bytes_accessed=int((3 * B_pad * N * D_pad + D_pad * D_pad + D_pad
                            + 2 * B_pad * D_pad + G) * 4),
    )

    out_shapes = (
        jax.ShapeDtypeStruct((B_pad, D_pad), jnp.float32),   # sent_a_hat_n
        jax.ShapeDtypeStruct((B_pad, D_pad), jnp.float32),   # sent_a_n
        jax.ShapeDtypeStruct((G, 1, 1), jnp.float32),        # per-step partial loss
    )

    ahat_n, a_n, loss_parts = pl.pallas_call(
        _flow_cell_qe_kernel,
        out_shape=out_shapes,
        grid_spec=pltpu.PrefetchScalarGridSpec(
            num_scalar_prefetch=0,
            grid=(G,),
            in_specs=[
                pl.BlockSpec((bt, N, 2 * D_pad), lambda g: (g, 0, 0)),  # sent Q|A
                pl.BlockSpec((bt, N, D_pad), lambda g: (g, 0, 1)),      # entity_a
                pl.BlockSpec((D_pad, D_pad), lambda g: (0, 0)),         # weight
                pl.BlockSpec((1, D_pad), lambda g: (0, 0)),             # bias
            ],
            out_specs=[
                pl.BlockSpec((bt, D_pad), lambda g: (g, 0)),
                pl.BlockSpec((bt, D_pad), lambda g: (g, 0)),
                pl.BlockSpec((1, 1, 1), lambda g: (g, 0, 0)),
            ],
        ),
        compiler_params=pltpu.CompilerParams(
            dimension_semantics=("parallel",),      # no resident accumulator
            vmem_limit_bytes=vmem_limit),
        cost_estimate=cost,
    )(sent2, ent2, weight, b2)

    return ahat_n[:B, :D], a_n[:B, :D], jnp.sum(loss_parts)


def flow_cell_qe_reference(sent_emb, entity_emb, weight, bias):
    """Pure-JAX reference mirroring the PyTorch forward."""
    sent_q = sent_emb[:, 0::2, :]
    sent_a = sent_emb[:, 1::2, :]
    entity_a = entity_emb[:, 1::2, :]
    sent_mask = jnp.sum(sent_emb[:, ::2], -1) != 0
    N = sent_mask.shape[1]
    n_valid = jnp.sum(sent_mask.astype(jnp.int32), -1)
    last_idx = (n_valid - 1) % N
    last_mask = jnp.arange(N)[None, :] == last_idx[:, None]
    flow_mask = sent_mask & ~last_mask
    a_hat = sent_q + entity_a @ weight.T + bias
    fm = flow_mask[..., None].astype(a_hat.dtype)
    diff = a_hat * fm - sent_a * fm
    loss = jnp.sum(diff * diff)
    ahat_n = jnp.take_along_axis(a_hat, last_idx[:, None, None], axis=1)[:, 0]
    a_n = jnp.take_along_axis(sent_a, last_idx[:, None, None], axis=1)[:, 0]
    return ahat_n, a_n, loss


def _run_case(key, B, S, D, valid_pairs):
    k1, k2, k3, k4 = jax.random.split(key, 4)
    sent_emb = jax.random.normal(k1, (B, S, D), jnp.float32)
    entity_emb = jax.random.normal(k2, (B, S, D), jnp.float32)

    # Zero out Q slots past each row's valid-pair count (padding semantics).
    N = S // 2
    q_valid = (jnp.arange(N)[None, :] < valid_pairs[:, None]).astype(jnp.float32)
    sent_emb = sent_emb.at[:, 0::2, :].multiply(q_valid[:, :, None])

    bound = 1.0 / jnp.sqrt(jnp.float32(D))
    weight = jax.random.uniform(k3, (D, D), jnp.float32, -bound, bound)
    bias = jax.random.uniform(k4, (D,), jnp.float32, -bound, bound)

    ahat_n, a_n, loss = flow_cell_qe(sent_emb, entity_emb, weight, bias)
    jax.block_until_ready((ahat_n, a_n, loss))

    r_ahat, r_a, r_loss = flow_cell_qe_reference(sent_emb, entity_emb, weight, bias)
    assert ahat_n.shape == r_ahat.shape and a_n.shape == r_a.shape
    assert jnp.allclose(ahat_n, r_ahat, atol=1e-4, rtol=1e-4)
    assert jnp.allclose(a_n, r_a, atol=1e-4, rtol=1e-4)
    assert jnp.allclose(loss, r_loss, atol=1e-2, rtol=1e-4)


if __name__ == "__main__":
    key = jax.random.PRNGKey(0)
    k_small, k_large, k_odd = jax.random.split(key, 3)

    # Small case: whole (padded-to-8) batch in one grid step.
    _run_case(k_small, B=2, S=16, D=128,
              valid_pairs=jnp.array([5, 8], dtype=jnp.int32))

    # Larger case: exercises batch padding, multiple grid steps, and the
    # parallel partial-loss reduction.
    B2 = 40
    vp = (jnp.arange(B2, dtype=jnp.int32) % 8) + 1   # 1..8 valid Q/A pairs
    _run_case(k_large, B=B2, S=16, D=128, valid_pairs=vp)

    # Lane-unaligned flow_size: exercises the D -> 128 padding path.
    _run_case(k_odd, B=3, S=8, D=96,
              valid_pairs=jnp.array([2, 4, 1], dtype=jnp.int32))

    print("KERNEL_OK")
</pallas_src>

<mosaic_0001>
module attributes {stable_mosaic.version = 11 : i64} {
  func.func @_flow_cell_qe_kernel(%arg0: i32, %arg1: memref<8x8x256xf32, #tpu.memory_space<vmem>>, %arg2: memref<8x8x128xf32, #tpu.memory_space<vmem>>, %arg3: memref<128x128xf32, #tpu.memory_space<vmem>>, %arg4: memref<1x128xf32, #tpu.memory_space<vmem>>, %arg5: memref<8x128xf32, #tpu.memory_space<vmem>>, %arg6: memref<8x128xf32, #tpu.memory_space<vmem>>, %arg7: memref<1x1x1xf32, #tpu.memory_space<vmem>>) attributes {dimension_semantics = [#tpu.dimension_semantics<parallel>], iteration_bounds = array<i64: 1>, scalar_prefetch = 0 : i64, scratch_operands = 0 : i64, tpu.core_type = #tpu.core_type<tc>, window_params = [{transform_indices = @transform_0, window_bounds = array<i64: 8, 8, 256>}, {transform_indices = @transform_1, window_bounds = array<i64: 8, 8, 128>}, {pipeline_mode = #tpu.pipeline_mode<synchronous>, transform_indices = @transform_2, window_bounds = array<i64: 128, 128>}, {pipeline_mode = #tpu.pipeline_mode<synchronous>, transform_indices = @transform_3, window_bounds = array<i64: 1, 128>}, {transform_indices = @transform_4, window_bounds = array<i64: 8, 128>}, {transform_indices = @transform_5, window_bounds = array<i64: 8, 128>}, {transform_indices = @transform_6, window_bounds = array<i64: 1, 1, 1>}]} {
    %c0 = arith.constant 0 : index
    %c0_0 = arith.constant 0 : index
    %c0_1 = arith.constant 0 : index
    %0 = vector.load %arg1[%c0, %c0_0, %c0_1] : memref<8x8x256xf32, #tpu.memory_space<vmem>>, vector<8x8x128xf32>
    %c0_2 = arith.constant 0 : index
    %c0_3 = arith.constant 0 : index
    %c128 = arith.constant 128 : index
    %1 = vector.load %arg1[%c0_2, %c0_3, %c128] : memref<8x8x256xf32, #tpu.memory_space<vmem>>, vector<8x8x128xf32>
    %c0_4 = arith.constant 0 : index
    %c0_5 = arith.constant 0 : index
    %c0_6 = arith.constant 0 : index
    %2 = vector.load %arg2[%c0_4, %c0_5, %c0_6] : memref<8x8x128xf32, #tpu.memory_space<vmem>>, vector<8x8x128xf32>
    %c0_7 = arith.constant 0 : index
    %c0_8 = arith.constant 0 : index
    %3 = vector.load %arg3[%c0_7, %c0_8] : memref<128x128xf32, #tpu.memory_space<vmem>>, vector<128x128xf32>
    %c0_9 = arith.constant 0 : index
    %c0_10 = arith.constant 0 : index
    %4 = vector.load %arg4[%c0_9, %c0_10] : memref<1x128xf32, #tpu.memory_space<vmem>>, vector<1x128xf32>
    %cst = arith.constant dense<0.000000e+00> : vector<8x8x128xf32>
    %5 = tpu.matmul %2, %3, %cst {dimension_numbers = #tpu.dot_dimension_numbers<[2], [1], [0, 1], [0], [0, 0, 0, 1, 1, 0], [], []>} : vector<8x8x128xf32>, vector<128x128xf32>, vector<8x8x128xf32> -> vector<8x8x128xf32>
    %6 = arith.addf %0, %5 : vector<8x8x128xf32>
    %7 = vector.shape_cast %4 : vector<1x128xf32> to vector<1x1x128xf32>
    %8 = vector.broadcast %7 : vector<1x1x128xf32> to vector<8x8x128xf32>
    %9 = arith.addf %6, %8 : vector<8x8x128xf32>
    %cst_11 = arith.constant dense<0.000000e+00> : vector<8x8xf32>
    %10 = vector.multi_reduction <add>, %0, %cst_11 [2] : vector<8x8x128xf32> to vector<8x8xf32>
    %11 = vector.shape_cast %10 : vector<8x8xf32> to vector<8x8x1xf32>
    %cst_12 = arith.constant 0.000000e+00 : f32
    %12 = vector.broadcast %cst_12 : f32 to vector<8x8x1xf32>
    %13 = arith.cmpf one, %11, %12 : vector<8x8x1xf32>
    %14 = arith.extui %13 : vector<8x8x1xi1> to vector<8x8x1xi32>
    %cst_13 = arith.constant dense<0> : vector<8x1xi32>
    %15 = vector.multi_reduction <add>, %14, %cst_13 [1] : vector<8x8x1xi32> to vector<8x1xi32>
    %16 = vector.shape_cast %15 : vector<8x1xi32> to vector<8x1x1xi32>
    %c0_i32 = arith.constant 0 : i32
    %17 = vector.broadcast %c0_i32 : i32 to vector<8x1x1xi32>
    %18 = arith.cmpi sgt, %16, %17 : vector<8x1x1xi32>
    %c1_i32 = arith.constant 1 : i32
    %19 = vector.broadcast %c1_i32 : i32 to vector<8x1x1xi32>
    %20 = arith.subi %16, %19 : vector<8x1x1xi32>
    %c7_i32 = arith.constant 7 : i32
    %21 = vector.broadcast %c7_i32 : i32 to vector<8x1x1xi32>
    %22 = arith.select %18, %20, %21 : vector<8x1x1xi1>, vector<8x1x1xi32>
    %23 = tpu.iota {dimensions = array<i32: 1>} : vector<8x8x1xi32>
    %24 = vector.broadcast %22 : vector<8x1x1xi32> to vector<8x8x1xi32>
    %25 = arith.cmpi eq, %23, %24 : vector<8x8x1xi32>
    %cst_14 = arith.constant dense<true> : vector<8x8x1xi1>
    %26 = arith.xori %25, %cst_14 : vector<8x8x1xi1>
    %27 = arith.andi %13, %26 : vector<8x8x1xi1>
    %28 = arith.extui %27 : vector<8x8x1xi1> to vector<8x8x1xi32>
    %29 = arith.sitofp %28 : vector<8x8x1xi32> to vector<8x8x1xf32>
    %30 = arith.subf %9, %1 : vector<8x8x128xf32>
    %31 = vector.broadcast %29 : vector<8x8x1xf32> to vector<8x8x128xf32>
    %32 = arith.mulf %30, %31 : vector<8x8x128xf32>
    %33 = arith.mulf %32, %32 : vector<8x8x128xf32>
    %34 = vector.shape_cast %33 : vector<8x8x128xf32> to vector<1x8x8x128xf32>
    %cst_15 = arith.constant dense<0.000000e+00> : vector<1xf32>
    %35 = vector.multi_reduction <add>, %34, %cst_15 [1, 2, 3] : vector<1x8x8x128xf32> to vector<1xf32>
    %36 = vector.shape_cast %35 : vector<1xf32> to vector<1x1x1x1xf32>
    %37 = vector.extract %36[0, 0, 0, 0] : f32 from vector<1x1x1x1xf32>
    %38 = vector.broadcast %37 : f32 to vector<1x1x1xf32>
    %c0_16 = arith.constant 0 : index
    %c0_17 = arith.constant 0 : index
    %c0_18 = arith.constant 0 : index
    %39 = vector.load %arg7[%c0_16, %c0_17, %c0_18] : memref<1x1x1xf32, #tpu.memory_space<vmem>>, vector<1x1x1xf32>
    tpu.vector_store %arg7[%c0_16, %c0_17, %c0_18], %38 {strides = array<i32>} : memref<1x1x1xf32, #tpu.memory_space<vmem>>, vector<1x1x1xf32>,
    %40 = arith.extui %25 : vector<8x8x1xi1> to vector<8x8x1xi32>
    %41 = arith.sitofp %40 : vector<8x8x1xi32> to vector<8x8x1xf32>
    %42 = vector.broadcast %41 : vector<8x8x1xf32> to vector<8x8x128xf32>
    %43 = arith.mulf %9, %42 : vector<8x8x128xf32>
    %cst_19 = arith.constant dense<0.000000e+00> : vector<8x128xf32>
    %44 = vector.multi_reduction <add>, %43, %cst_19 [1] : vector<8x8x128xf32> to vector<8x128xf32>
    %c0_20 = arith.constant 0 : index
    %c0_21 = arith.constant 0 : index
    %45 = vector.load %arg5[%c0_20, %c0_21] : memref<8x128xf32, #tpu.memory_space<vmem>>, vector<8x128xf32>
    tpu.vector_store %arg5[%c0_20, %c0_21], %44 {strides = array<i32>} : memref<8x128xf32, #tpu.memory_space<vmem>>, vector<8x128xf32>,
    %46 = vector.broadcast %41 : vector<8x8x1xf32> to vector<8x8x128xf32>
    %47 = arith.mulf %1, %46 : vector<8x8x128xf32>
    %cst_22 = arith.constant dense<0.000000e+00> : vector<8x128xf32>
    %48 = vector.multi_reduction <add>, %47, %cst_22 [1] : vector<8x8x128xf32> to vector<8x128xf32>
    %c0_23 = arith.constant 0 : index
    %c0_24 = arith.constant 0 : index
    %49 = vector.load %arg6[%c0_23, %c0_24] : memref<8x128xf32, #tpu.memory_space<vmem>>, vector<8x128xf32>
    tpu.vector_store %arg6[%c0_23, %c0_24], %48 {strides = array<i32>} : memref<8x128xf32, #tpu.memory_space<vmem>>, vector<8x128xf32>,
    return
  }
  func.func @transform_0(%arg0: i32) -> (i32, i32, i32) {
    %c0_i32 = arith.constant 0 : i32
    %c0_i32_0 = arith.constant 0 : i32
    %c0_i32_1 = arith.constant 0 : i32
    return %arg0, %c0_i32, %c0_i32_0 : i32, i32, i32
  }
  func.func @transform_1(%arg0: i32) -> (i32, i32, i32) {
    %c0_i32 = arith.constant 0 : i32
    %c1_i32 = arith.constant 1 : i32
    %c0_i32_0 = arith.constant 0 : i32
    return %arg0, %c0_i32, %c1_i32 : i32, i32, i32
  }
  func.func @transform_2(%arg0: i32) -> (i32, i32) {
    %c0_i32 = arith.constant 0 : i32
    %c0_i32_0 = arith.constant 0 : i32
    %c0_i32_1 = arith.constant 0 : i32
    return %c0_i32, %c0_i32_0 : i32, i32
  }
  func.func @transform_3(%arg0: i32) -> (i32, i32) {
    %c0_i32 = arith.constant 0 : i32
    %c0_i32_0 = arith.constant 0 : i32
    %c0_i32_1 = arith.constant 0 : i32
    return %c0_i32, %c0_i32_0 : i32, i32
  }
  func.func @transform_4(%arg0: i32) -> (i32, i32) {
    %c0_i32 = arith.constant 0 : i32
    %c0_i32_0 = arith.constant 0 : i32
    return %arg0, %c0_i32 : i32, i32
  }
  func.func @transform_5(%arg0: i32) -> (i32, i32) {
    %c0_i32 = arith.constant 0 : i32
    %c0_i32_0 = arith.constant 0 : i32
    return %arg0, %c0_i32 : i32, i32
  }
  func.func @transform_6(%arg0: i32) -> (i32, i32, i32) {
    %c0_i32 = arith.constant 0 : i32
    %c0_i32_0 = arith.constant 0 : i32
    %c0_i32_1 = arith.constant 0 : i32
    return %arg0, %c0_i32, %c0_i32_0 : i32, i32, i32
  }
}

</mosaic_0001>

<llo_original>
// kernel: tpu_custom_call.1
$region0: #{tpu_custom_call.1}
  #allocation0 [shape = 'u32[]', space=smem, size = 0x4, offset = 0x4, fixed_abs, tag = 'smem constant byte address 0x4 - core index']
  #allocation1 [shape = 'u32[72,128]{1,0:T(1,128)}', space=vmem, size = 0x9000, scoped, tag = 'internal scratch']
  %s0 = inlined_call_operand.hbm [shape: f32[8,8,256], index: 0, kind: input, shape index: {}]
  %s1 = inlined_call_operand.hbm [shape: f32[8,8,256], index: 1, kind: input, shape index: {}]
  %s2 = inlined_call_operand.hbm [shape: f32[128,128], index: 2, kind: input, shape index: {}]
  %s3 = inlined_call_operand.vmem [shape: f32[1,128], index: 3, kind: input, shape index: {}]
  %s4 = inlined_call_operand.hbm [shape: f32[8,128], index: 4, kind: output, shape index: {0}]
  %s5 = inlined_call_operand.hbm [shape: f32[8,128], index: 5, kind: output, shape index: {1}]
  %s6 = inlined_call_operand.hbm [shape: f32[1,1,1], index: 6, kind: output, shape index: {2}]
  %7 = xla_tuple %s4, %s5, %s6
  %s8 = sld [smem:[#allocation0]]
  $region54: #{tpu_custom_call.1} parent=0
    _
  %s10 = ssub.s32 1, %s8
  %s11 = scalar_select 0, %s10, %s8
  $region1: #{tpu_custom_call.1} parent=0
    #allocation2 [shape = 'u8[65536]{0}', space=vmem, size = 0x10000, scoped, tag = 'input window, operand 0, single buffered']
    #allocation3 [shape = 's32[1]{0}', space=sflag, size = 0x4, scoped, tag = 'scoped memory for tpu_custom_call.1']
    #allocation4 [shape = 's32[1]{0}', space=sflag, size = 0x4, scoped, tag = 'scoped memory for tpu_custom_call.1']
    #allocation5 [shape = 'u8[32768]{0}', space=vmem, size = 0x8000, scoped, tag = 'input window, operand 1, single buffered']
    #allocation6 [shape = 's32[1]{0}', space=sflag, size = 0x4, scoped, tag = 'scoped memory for tpu_custom_call.1']
    #allocation7 [shape = 'u8[65536]{0}', space=vmem, size = 0x10000, scoped, tag = 'input window, operand 2, single buffered']
    #allocation8 [shape = 'u8[4096]{0}', space=vmem, size = 0x1000, scoped, tag = 'output window, operand 0, single buffered']
    #allocation9 [shape = 'u8[4096]{0}', space=vmem, size = 0x1000, scoped, tag = 'output window, operand 1, single buffered']
    #allocation10 [shape = 's32[1]{0}', space=sflag, size = 0x4, scoped, tag = 'scoped memory for tpu_custom_call.1']
    #allocation11 [shape = 'u8[512]{0}', space=vmem, size = 0x400, scoped, tag = 'output window, operand 2, single buffered']
    %12 = vsyncpa [#allocation3], 0
    %13 = vsyncpa [#allocation6], 0
    %14 = vsyncpa [#allocation4], 0
    %15 = vsyncpa [#allocation10], 0
    // Predicated region
    $region2: #{tpu_custom_call.1} parent=1 // pred_check
      _
    $region3: #{tpu_custom_call.1} parent=1 // pred_check_branch
      %17 = sbr.rel (0) target = $region5
    $region4: #{tpu_custom_call.1} parent=1 // pred_region
      %19 = vsyncadd [#allocation3], 0
      %s20 = sshll.u32 %s0, 4
      %s21 = int_to_ptr.hbm [resolvable:$true] %s20
      %s22 = sshll.u32 [#allocation2], 4
      %s23 = int_to_ptr.vmem [resolvable:$true] %s22
      %28 = dma.hbm_to_vmem [thread:$0]  %s21, 2048, %s23, [#allocation3], 256, 256, 16
    $region5: #{tpu_custom_call.1} parent=1 // pred_fallthru
      _
    // Predicated region
    $region6: #{tpu_custom_call.1} parent=1 // pred_check
      _
    $region7: #{tpu_custom_call.1} parent=1 // pred_check_branch
      %30 = sbr.rel (0) target = $region9
    $region8: #{tpu_custom_call.1} parent=1 // pred_region
      %32 = vsyncadd [#allocation6], 0
      %s33 = scalar_lea.hbm %s1, 8
      %s34 = sshll.u32 %s33, 4
      %s35 = int_to_ptr.hbm [resolvable:$true] %s34
      %s36 = sshll.u32 [#allocation5], 4
      %s37 = int_to_ptr.vmem [resolvable:$true] %s36
      %42 = dma.hbm_to_vmem [thread:$0]  %s35, 1024, %s37, [#allocation6], 256, 128, 8
    $region9: #{tpu_custom_call.1} parent=1 // pred_fallthru
      _
    // Predicated region
    $region10: #{tpu_custom_call.1} parent=1 // pred_check
      _
    $region11: #{tpu_custom_call.1} parent=1 // pred_check_branch
      %44 = sbr.rel (0) target = $region13
    $region12: #{tpu_custom_call.1} parent=1 // pred_region
      %46 = vsyncadd [#allocation6], 0
      %s47 = sshll.u32 %s2, 4
      %s48 = int_to_ptr.hbm [resolvable:$true] %s47
      %s49 = sshll.u32 [#allocation7], 4
      %s50 = int_to_ptr.vmem [resolvable:$true] %s49
      %55 = dma.hbm_to_vmem [thread:$0]  %s48, 2048, %s50, [#allocation6], 128, 128, 8
    $region13: #{tpu_custom_call.1} parent=1 // pred_fallthru
      _
    // Predicated region
    $region14: #{tpu_custom_call.1} parent=1 // pred_check
      _
    $region15: #{tpu_custom_call.1} parent=1 // pred_check_branch
      %57 = sbr.rel (0) target = $region17
    $region16: #{tpu_custom_call.1} parent=1 // pred_region
      _
    $region17: #{tpu_custom_call.1} parent=1 // pred_fallthru
      _
    // Predicated region
    $region18: #{tpu_custom_call.1} parent=1 // pred_check
      _
    $region19: #{tpu_custom_call.1} parent=1 // pred_check_branch
      %59 = sbr.rel (0) target = $region21
    $region20: #{tpu_custom_call.1} parent=1 // pred_region
      %61 = dma.done [#allocation3], 2048
    $region21: #{tpu_custom_call.1} parent=1 // pred_fallthru
      _
    // Predicated region
    $region22: #{tpu_custom_call.1} parent=1 // pred_check
      _
    $region23: #{tpu_custom_call.1} parent=1 // pred_check_branch
      %63 = sbr.rel (0) target = $region25
    $region24: #{tpu_custom_call.1} parent=1 // pred_region
      %65 = dma.done [#allocation6], 1024
    $region25: #{tpu_custom_call.1} parent=1 // pred_fallthru
      _
    // Predicated region
    $region26: #{tpu_custom_call.1} parent=1 // pred_check
      _
    $region27: #{tpu_custom_call.1} parent=1 // pred_check_branch
      %67 = sbr.rel (0) target = $region29
    $region28: #{tpu_custom_call.1} parent=1 // pred_region
      %69 = dma.done [#allocation6], 2048
    $region29: #{tpu_custom_call.1} parent=1 // pred_fallthru
      _
    %v70 = vld [vmem:[#allocation2] sm:$0xff]
    %v71 = vld [vmem:[#allocation2 + $0x10] sm:$0xff]
    %v72 = vld [vmem:[#allocation2 + $0x20] sm:$0xff]
    %v73 = vld [vmem:[#allocation2 + $0x30] sm:$0xff]
    %v74 = vld [vmem:[#allocation2 + $0x40] sm:$0xff]
    %v75 = vld [vmem:[#allocation2 + $0x50] sm:$0xff]
    %v76 = vld [vmem:[#allocation2 + $0x60] sm:$0xff]
    %v77 = vld [vmem:[#allocation2 + $0x70] sm:$0xff]
    %v78 = vld [vmem:[#allocation2 + $0x8] sm:$0xff]
    %v79 = vld [vmem:[#allocation2 + $0x18] sm:$0xff]
    %v80 = vld [vmem:[#allocation2 + $0x28] sm:$0xff]
    %v81 = vld [vmem:[#allocation2 + $0x38] sm:$0xff]
    %v82 = vld [vmem:[#allocation2 + $0x48] sm:$0xff]
    %v83 = vld [vmem:[#allocation2 + $0x58] sm:$0xff]
    %v84 = vld [vmem:[#allocation2 + $0x68] sm:$0xff]
    %v85 = vld [vmem:[#allocation2 + $0x78] sm:$0xff]
    %v86 = vld [vmem:[#allocation5] sm:$0xff]
    %v87 = vld [vmem:[#allocation5 + $0x8] sm:$0xff]
    %v88 = vld [vmem:[#allocation5 + $0x10] sm:$0xff]
    %v89 = vld [vmem:[#allocation5 + $0x18] sm:$0xff]
    %v90 = vld [vmem:[#allocation5 + $0x20] sm:$0xff]
    %v91 = vld [vmem:[#allocation5 + $0x28] sm:$0xff]
    %v92 = vld [vmem:[#allocation5 + $0x30] sm:$0xff]
    %v93 = vld [vmem:[#allocation5 + $0x38] sm:$0xff]
    %v94 = vld [vmem:[#allocation7] sm:$0xff]
    %v95 = vld [vmem:[#allocation7 + $0x8] sm:$0xff]
    %v96 = vld [vmem:[#allocation7 + $0x10] sm:$0xff]
    %v97 = vld [vmem:[#allocation7 + $0x18] sm:$0xff]
    %v98 = vld [vmem:[#allocation7 + $0x20] sm:$0xff]
    %v99 = vld [vmem:[#allocation7 + $0x28] sm:$0xff]
    %v100 = vld [vmem:[#allocation7 + $0x30] sm:$0xff]
    %v101 = vld [vmem:[#allocation7 + $0x38] sm:$0xff]
    %v102 = vld [vmem:[#allocation7 + $0x40] sm:$0xff]
    %v103 = vld [vmem:[#allocation7 + $0x48] sm:$0xff]
    %v104 = vld [vmem:[#allocation7 + $0x50] sm:$0xff]
    %v105 = vld [vmem:[#allocation7 + $0x58] sm:$0xff]
    %v106 = vld [vmem:[#allocation7 + $0x60] sm:$0xff]
    %v107 = vld [vmem:[#allocation7 + $0x68] sm:$0xff]
    %v108 = vld [vmem:[#allocation7 + $0x70] sm:$0xff]
    %v109 = vld [vmem:[#allocation7 + $0x78] sm:$0xff]
    %v110 = vld [vmem:[%s3] sm:$0x1]
    %111 = vmatpush.xpose.msra.mxu0 %v109
    %112 = vmatpush.xpose.msra.mxu0 %v108
    %113 = vmatpush.xpose.msra.mxu0 %v107
    %114 = vmatpush.xpose.msra.mxu0 %v106
    %115 = vmatpush.xpose.msra.mxu0 %v105
    %116 = vmatpush.xpose.msra.mxu0 %v104
    %117 = vmatpush.xpose.msra.mxu0 %v103
    %118 = vmatpush.xpose.msra.mxu0 %v102
    %119 = vmatpush.xpose.msra.mxu0 %v101
    %120 = vmatpush.xpose.msra.mxu0 %v100
    %121 = vmatpush.xpose.msra.mxu0 %v99
    %122 = vmatpush.xpose.msra.mxu0 %v98
    %123 = vmatpush.xpose.msra.mxu0 %v97
    %124 = vmatpush.xpose.msra.mxu0 %v96
    %125 = vmatpush.xpose.msra.mxu0 %v95
    %126 = vmatpush.xpose.msra.mxu0 %v94
    %127 = vmatmul.f32.gmra.mxu0 %v86
    %v128 = vpop.f32.mrf.mxu0
    %v129 = vadd.f32 0.0, %v128
    %130 = vmatmul.f32.gmra.mxu0 %v87
    %v131 = vpop.f32.mrf.mxu0
    %v132 = vadd.f32 0.0, %v131
    %133 = vmatmul.f32.gmra.mxu0 %v88
    %v134 = vpop.f32.mrf.mxu0
    %v135 = vadd.f32 0.0, %v134
    %136 = vmatmul.f32.gmra.mxu0 %v89
    %v137 = vpop.f32.mrf.mxu0
    %v138 = vadd.f32 0.0, %v137
    %139 = vmatmul.f32.gmra.mxu0 %v90
    %v140 = vpop.f32.mrf.mxu0
    %v141 = vadd.f32 0.0, %v140
    %142 = vmatmul.f32.gmra.mxu0 %v91
    %v143 = vpop.f32.mrf.mxu0
    %v144 = vadd.f32 0.0, %v143
    %145 = vmatmul.f32.gmra.mxu0 %v92
    %v146 = vpop.f32.mrf.mxu0
    %v147 = vadd.f32 0.0, %v146
    %148 = vmatmul.f32.gmra.mxu0 %v93
    %v149 = vpop.f32.mrf.mxu0
    %v150 = vadd.f32 0.0, %v149
    %151 = vdwg.mxu0
    %v152 = vadd.f32 %v70, %v129
    %v153 = vadd.f32 %v71, %v132
    %v154 = vadd.f32 %v72, %v135
    %v155 = vadd.f32 %v73, %v138
    %v156 = vadd.f32 %v74, %v141
    %v157 = vadd.f32 %v75, %v144
    %v158 = vadd.f32 %v76, %v147
    %v159 = vadd.f32 %v77, %v150
    %v161 = vperm.slane %v110, 0
    %v163 = vadd.f32 %v152, %v161
    %v164 = vadd.f32 %v153, %v161
    %v165 = vadd.f32 %v154, %v161
    %v166 = vadd.f32 %v155, %v161
    %v167 = vadd.f32 %v156, %v161
    %v168 = vadd.f32 %v157, %v161
    %v169 = vadd.f32 %v158, %v161
    %v170 = vadd.f32 %v159, %v161
    %171 = vadd.xlane.f32.xlu0 %v70
    %v172 = vpop.xlane.xlu0 %171
    %173 = vadd.xlane.f32.xlu0 %v71
    %v174 = vpop.xlane.xlu0 %173
    %175 = vadd.xlane.f32.xlu0 %v72
    %v176 = vpop.xlane.xlu0 %175
    %177 = vadd.xlane.f32.xlu0 %v73
    %v178 = vpop.xlane.xlu0 %177
    %179 = vadd.xlane.f32.xlu0 %v74
    %v180 = vpop.xlane.xlu0 %179
    %181 = vadd.xlane.f32.xlu0 %v75
    %v182 = vpop.xlane.xlu0 %181
    %183 = vadd.xlane.f32.xlu0 %v76
    %v184 = vpop.xlane.xlu0 %183
    %185 = vadd.xlane.f32.xlu0 %v77
    %v186 = vpop.xlane.xlu0 %185
    %vm187 = vcmp.ne.f32.partialorder %v172, 0.0
    %vm188 = vcmp.ne.f32.partialorder %v174, 0.0
    %vm189 = vcmp.ne.f32.partialorder %v176, 0.0
    %vm190 = vcmp.ne.f32.partialorder %v178, 0.0
    %vm191 = vcmp.ne.f32.partialorder %v180, 0.0
    %vm192 = vcmp.ne.f32.partialorder %v182, 0.0
    %vm193 = vcmp.ne.f32.partialorder %v184, 0.0
    %vm194 = vcmp.ne.f32.partialorder %v186, 0.0
    %v195 = vsel %vm187, 1, 0
    %v196 = vsel %vm188, 1, 0
    %v197 = vsel %vm189, 1, 0
    %v198 = vsel %vm190, 1, 0
    %v199 = vsel %vm191, 1, 0
    %v200 = vsel %vm192, 1, 0
    %v201 = vsel %vm193, 1, 0
    %v202 = vsel %vm194, 1, 0
    %v203 = vrot.slane %v195, 4
    %v204 = vadd.s32 %v195, %v203
    %v205 = vrot.slane %v204, 2
    %v206 = vadd.s32 %v204, %v205
    %v207 = vrot.slane %v206, 1
    %v208 = vadd.s32 %v206, %v207
    %v209 = vrot.slane %v196, 4
    %v210 = vadd.s32 %v196, %v209
    %v211 = vrot.slane %v210, 2
    %v212 = vadd.s32 %v210, %v211
    %v213 = vrot.slane %v212, 1
    %v214 = vadd.s32 %v212, %v213
    %v215 = vrot.slane %v197, 4
    %v216 = vadd.s32 %v197, %v215
    %v217 = vrot.slane %v216, 2
    %v218 = vadd.s32 %v216, %v217
    %v219 = vrot.slane %v218, 1
    %v220 = vadd.s32 %v218, %v219
    %v221 = vrot.slane %v198, 4
    %v222 = vadd.s32 %v198, %v221
    %v223 = vrot.slane %v222, 2
    %v224 = vadd.s32 %v222, %v223
    %v225 = vrot.slane %v224, 1
    %v226 = vadd.s32 %v224, %v225
    %v227 = vrot.slane %v199, 4
    %v228 = vadd.s32 %v199, %v227
    %v229 = vrot.slane %v228, 2
    %v230 = vadd.s32 %v228, %v229
    %v231 = vrot.slane %v230, 1
    %v232 = vadd.s32 %v230, %v231
    %v233 = vrot.slane %v200, 4
    %v234 = vadd.s32 %v200, %v233
    %v235 = vrot.slane %v234, 2
    %v236 = vadd.s32 %v234, %v235
    %v237 = vrot.slane %v236, 1
    %v238 = vadd.s32 %v236, %v237
    %v239 = vrot.slane %v201, 4
    %v240 = vadd.s32 %v201, %v239
    %v241 = vrot.slane %v240, 2
    %v242 = vadd.s32 %v240, %v241
    %v243 = vrot.slane %v242, 1
    %v244 = vadd.s32 %v242, %v243
    %v245 = vrot.slane %v202, 4
    %v246 = vadd.s32 %v202, %v245
    %v247 = vrot.slane %v246, 2
    %v248 = vadd.s32 %v246, %v247
    %v249 = vrot.slane %v248, 1
    %v250 = vadd.s32 %v248, %v249
    %vm251 = vcmp.gt.s32.totalorder %v208, 0
    %vm252 = vcmp.gt.s32.totalorder %v214, 0
    %vm253 = vcmp.gt.s32.totalorder %v220, 0
    %vm254 = vcmp.gt.s32.totalorder %v226, 0
    %vm255 = vcmp.gt.s32.totalorder %v232, 0
    %vm256 = vcmp.gt.s32.totalorder %v238, 0
    %vm257 = vcmp.gt.s32.totalorder %v244, 0
    %vm258 = vcmp.gt.s32.totalorder %v250, 0
    %v259 = vsub.s32 %v208, 1
    %v260 = vsub.s32 %v214, 1
    %v261 = vsub.s32 %v220, 1
    %v262 = vsub.s32 %v226, 1
    %v263 = vsub.s32 %v232, 1
    %v264 = vsub.s32 %v238, 1
    %v265 = vsub.s32 %v244, 1
    %v266 = vsub.s32 %v250, 1
    %v267 = vsel %vm251, %v259, 7
    %v268 = vsel %vm252, %v260, 7
    %v269 = vsel %vm253, %v261, 7
    %v270 = vsel %vm254, %v262, 7
    %v271 = vsel %vm255, %v263, 7
    %v272 = vsel %vm256, %v264, 7
    %v273 = vsel %vm257, %v265, 7
    %v274 = vsel %vm258, %v266, 7
    %v275 = vlaneseq
    %v276 = vshrl.u32 %v275, 7
    %vm277 = vcmp.eq.s32.totalorder %v276, %v267
    %vm278 = vcmp.eq.s32.totalorder %v276, %v268
    %vm279 = vcmp.eq.s32.totalorder %v276, %v269
    %vm280 = vcmp.eq.s32.totalorder %v276, %v270
    %vm281 = vcmp.eq.s32.totalorder %v276, %v271
    %vm282 = vcmp.eq.s32.totalorder %v276, %v272
    %vm283 = vcmp.eq.s32.totalorder %v276, %v273
    %vm284 = vcmp.eq.s32.totalorder %v276, %v274
    %vm285 = vmxor %vm277, 1
    %vm286 = vmxor %vm278, 1
    %vm287 = vmxor %vm279, 1
    %vm288 = vmxor %vm280, 1
    %vm289 = vmxor %vm281, 1
    %vm290 = vmxor %vm282, 1
    %vm291 = vmxor %vm283, 1
    %vm292 = vmxor %vm284, 1
    %vm293 = vmand %vm187, %vm285
    %vm294 = vmand %vm188, %vm286
    %vm295 = vmand %vm189, %vm287
    %vm296 = vmand %vm190, %vm288
    %vm297 = vmand %vm191, %vm289
    %vm298 = vmand %vm192, %vm290
    %vm299 = vmand %vm193, %vm291
    %vm300 = vmand %vm194, %vm292
    %v301 = vsel %vm293, 1, 0
    %v302 = vsel %vm294, 1, 0
    %v303 = vsel %vm295, 1, 0
    %v304 = vsel %vm296, 1, 0
    %v305 = vsel %vm297, 1, 0
    %v306 = vsel %vm298, 1, 0
    %v307 = vsel %vm299, 1, 0
    %v308 = vsel %vm300, 1, 0
    %v309 = vcvt.s32.f32 %v301
    %v310 = vcvt.s32.f32 %v302
    %v311 = vcvt.s32.f32 %v303
    %v312 = vcvt.s32.f32 %v304
    %v313 = vcvt.s32.f32 %v305
    %v314 = vcvt.s32.f32 %v306
    %v315 = vcvt.s32.f32 %v307
    %v316 = vcvt.s32.f32 %v308
    %v317 = vsub.f32 %v163, %v78
    %v318 = vsub.f32 %v164, %v79
    %v319 = vsub.f32 %v165, %v80
    %v320 = vsub.f32 %v166, %v81
    %v321 = vsub.f32 %v167, %v82
    %v322 = vsub.f32 %v168, %v83
    %v323 = vsub.f32 %v169, %v84
    %v324 = vsub.f32 %v170, %v85
    %v325 = vmul.f32 %v317, %v309
    %v326 = vmul.f32 %v318, %v310
    %v327 = vmul.f32 %v319, %v311
    %v328 = vmul.f32 %v320, %v312
    %v329 = vmul.f32 %v321, %v313
    %v330 = vmul.f32 %v322, %v314
    %v331 = vmul.f32 %v323, %v315
    %v332 = vmul.f32 %v324, %v316
    %v333 = vmul.f32 %v325, %v325
    %v334 = vmul.f32 %v326, %v326
    %v335 = vmul.f32 %v327, %v327
    %v336 = vmul.f32 %v328, %v328
    %v337 = vmul.f32 %v329, %v329
    %v338 = vmul.f32 %v330, %v330
    %v339 = vmul.f32 %v331, %v331
    %v340 = vmul.f32 %v332, %v332
    %v341 = vadd.f32 %v333, %v334
    %v342 = vadd.f32 %v341, %v335
    %v343 = vadd.f32 %v342, %v336
    %v344 = vadd.f32 %v343, %v337
    %v345 = vadd.f32 %v344, %v338
    %v346 = vadd.f32 %v345, %v339
    %v347 = vadd.f32 %v346, %v340
    %348 = vadd.xlane.f32.xlu0 %v347
    %v349 = vpop.xlane.xlu0 %348
    %v350 = vrot.slane %v349, 4
    %v351 = vadd.f32 %v349, %v350
    %v352 = vrot.slane %v351, 2
    %v353 = vadd.f32 %v351, %v352
    %v354 = vrot.slane %v353, 1
    %v355 = vadd.f32 %v353, %v354
    %s356 = vtos %v355
    %v357 = vstv %s356
    %vm358 = vcmask 0
    %359 = vst.msk [vmem:[#allocation11] sm:$0x1] %vm358, %v357
    %v360 = vsel %vm277, 1, 0
    %v361 = vsel %vm278, 1, 0
    %v362 = vsel %vm279, 1, 0
    %v363 = vsel %vm280, 1, 0
    %v364 = vsel %vm281, 1, 0
    %v365 = vsel %vm282, 1, 0
    %v366 = vsel %vm283, 1, 0
    %v367 = vsel %vm284, 1, 0
    %v368 = vcvt.s32.f32 %v360
    %v369 = vcvt.s32.f32 %v361
    %v370 = vcvt.s32.f32 %v362
    %v371 = vcvt.s32.f32 %v363
    %v372 = vcvt.s32.f32 %v364
    %v373 = vcvt.s32.f32 %v365
    %v374 = vcvt.s32.f32 %v366
    %v375 = vcvt.s32.f32 %v367
    %v376 = vmul.f32 %v163, %v368
    %v377 = vmul.f32 %v164, %v369
    %v378 = vmul.f32 %v165, %v370
    %v379 = vmul.f32 %v166, %v371
    %v380 = vmul.f32 %v167, %v372
    %v381 = vmul.f32 %v168, %v373
    %v382 = vmul.f32 %v169, %v374
    %v383 = vmul.f32 %v170, %v375
    %v384 = vrot.slane %v376, 4
    %v385 = vadd.f32 %v376, %v384
    %v386 = vrot.slane %v385, 2
    %v387 = vadd.f32 %v385, %v386
    %v388 = vrot.slane %v387, 1
    %v389 = vadd.f32 %v387, %v388
    %v390 = vrot.slane %v377, 4
    %v391 = vadd.f32 %v377, %v390
    %v392 = vrot.slane %v391, 2
    %v393 = vadd.f32 %v391, %v392
    %v394 = vrot.slane %v393, 1
    %v395 = vadd.f32 %v393, %v394
    %v396 = vrot.slane %v378, 4
    %v397 = vadd.f32 %v378, %v396
    %v398 = vrot.slane %v397, 2
    %v399 = vadd.f32 %v397, %v398
    %v400 = vrot.slane %v399, 1
    %v401 = vadd.f32 %v399, %v400
    %v402 = vrot.slane %v379, 4
    %v403 = vadd.f32 %v379, %v402
    %v404 = vrot.slane %v403, 2
    %v405 = vadd.f32 %v403, %v404
    %v406 = vrot.slane %v405, 1
    %v407 = vadd.f32 %v405, %v406
    %v408 = vrot.slane %v380, 4
    %v409 = vadd.f32 %v380, %v408
    %v410 = vrot.slane %v409, 2
    %v411 = vadd.f32 %v409, %v410
    %v412 = vrot.slane %v411, 1
    %v413 = vadd.f32 %v411, %v412
    %v414 = vrot.slane %v381, 4
    %v415 = vadd.f32 %v381, %v414
    %v416 = vrot.slane %v415, 2
    %v417 = vadd.f32 %v415, %v416
    %v418 = vrot.slane %v417, 1
    %v419 = vadd.f32 %v417, %v418
    %v420 = vrot.slane %v382, 4
    %v421 = vadd.f32 %v382, %v420
    %v422 = vrot.slane %v421, 2
    %v423 = vadd.f32 %v421, %v422
    %v424 = vrot.slane %v423, 1
    %v425 = vadd.f32 %v423, %v424
    %v426 = vrot.slane %v383, 4
    %v427 = vadd.f32 %v383, %v426
    %v428 = vrot.slane %v427, 2
    %v429 = vadd.f32 %v427, %v428
    %v430 = vrot.slane %v429, 1
    %v431 = vadd.f32 %v429, %v430
    %vm440 = vcmask 1041409
    %v441 = vsel %vm440, %v395, %v389
    %vm442 = vcmask 1042434
    %v443 = vsel %vm442, %v401, %v441
    %vm444 = vcmask 1043459
    %v445 = vsel %vm444, %v407, %v443
    %vm446 = vcmask 1044484
    %v447 = vsel %vm446, %v413, %v445
    %vm448 = vcmask 1045509
    %v449 = vsel %vm448, %v419, %v447
    %vm450 = vcmask 1046534
    %v451 = vsel %vm450, %v425, %v449
    %vm452 = vcmask 1047559
    %v453 = vsel %vm452, %v431, %v451
    %455 = vst [vmem:[#allocation8] sm:$0xff] %v453
    %v456 = vmul.f32 %v78, %v368
    %v457 = vmul.f32 %v79, %v369
    %v458 = vmul.f32 %v80, %v370
    %v459 = vmul.f32 %v81, %v371
    %v460 = vmul.f32 %v82, %v372
    %v461 = vmul.f32 %v83, %v373
    %v462 = vmul.f32 %v84, %v374
    %v463 = vmul.f32 %v85, %v375
    %v464 = vrot.slane %v456, 4
    %v465 = vadd.f32 %v456, %v464
    %v466 = vrot.slane %v465, 2
    %v467 = vadd.f32 %v465, %v466
    %v468 = vrot.slane %v467, 1
    %v469 = vadd.f32 %v467, %v468
    %v470 = vrot.slane %v457, 4
    %v471 = vadd.f32 %v457, %v470
    %v472 = vrot.slane %v471, 2
    %v473 = vadd.f32 %v471, %v472
    %v474 = vrot.slane %v473, 1
    %v475 = vadd.f32 %v473, %v474
    %v476 = vrot.slane %v458, 4
    %v477 = vadd.f32 %v458, %v476
    %v478 = vrot.slane %v477, 2
    %v479 = vadd.f32 %v477, %v478
    %v480 = vrot.slane %v479, 1
    %v481 = vadd.f32 %v479, %v480
    %v482 = vrot.slane %v459, 4
    %v483 = vadd.f32 %v459, %v482
    %v484 = vrot.slane %v483, 2
    %v485 = vadd.f32 %v483, %v484
    %v486 = vrot.slane %v485, 1
    %v487 = vadd.f32 %v485, %v486
    %v488 = vrot.slane %v460, 4
    %v489 = vadd.f32 %v460, %v488
    %v490 = vrot.slane %v489, 2
    %v491 = vadd.f32 %v489, %v490
    %v492 = vrot.slane %v491, 1
    %v493 = vadd.f32 %v491, %v492
    %v494 = vrot.slane %v461, 4
    %v495 = vadd.f32 %v461, %v494
    %v496 = vrot.slane %v495, 2
    %v497 = vadd.f32 %v495, %v496
    %v498 = vrot.slane %v497, 1
    %v499 = vadd.f32 %v497, %v498
    %v500 = vrot.slane %v462, 4
    %v501 = vadd.f32 %v462, %v500
    %v502 = vrot.slane %v501, 2
    %v503 = vadd.f32 %v501, %v502
    %v504 = vrot.slane %v503, 1
    %v505 = vadd.f32 %v503, %v504
    %v506 = vrot.slane %v463, 4
    %v507 = vadd.f32 %v463, %v506
    %v508 = vrot.slane %v507, 2
    %v509 = vadd.f32 %v507, %v508
    %v510 = vrot.slane %v509, 1
    %v511 = vadd.f32 %v509, %v510
    %v520 = vsel %vm440, %v475, %v469
    %v521 = vsel %vm442, %v481, %v520
    %v522 = vsel %vm444, %v487, %v521
    %v523 = vsel %vm446, %v493, %v522
    %v524 = vsel %vm448, %v499, %v523
    %v525 = vsel %vm450, %v505, %v524
    %v526 = vsel %vm452, %v511, %v525
    %528 = vst [vmem:[#allocation9] sm:$0xff] %v526
    // Predicated region
    $region30: #{tpu_custom_call.1} parent=1 // pred_check
      _
    $region31: #{tpu_custom_call.1} parent=1 // pred_check_branch
      %530 = sbr.rel (0) target = $region33
    $region32: #{tpu_custom_call.1} parent=1 // pred_region
      %532 = vsyncadd [#allocation4], 0
      %s534 = sshll.u32 [#allocation8], 4
      %s535 = int_to_ptr.vmem [resolvable:$true] %s534
      %s536 = sshll.u32 %s4, 4
      %s537 = int_to_ptr.hbm [resolvable:$true] %s536
      %539 = dma.vmem_to_hbm [thread:$0]  %s535, 128, %s537, [#allocation4]
    $region33: #{tpu_custom_call.1} parent=1 // pred_fallthru
      _
    // Predicated region
    $region34: #{tpu_custom_call.1} parent=1 // pred_check
      _
    $region35: #{tpu_custom_call.1} parent=1 // pred_check_branch
      %541 = sbr.rel (0) target = $region37
    $region36: #{tpu_custom_call.1} parent=1 // pred_region
      %543 = vsyncadd [#allocation10], 0
      %s545 = sshll.u32 [#allocation9], 4
      %s546 = int_to_ptr.vmem [resolvable:$true] %s545
      %s547 = sshll.u32 %s5, 4
      %s548 = int_to_ptr.hbm [resolvable:$true] %s547
      %550 = dma.vmem_to_hbm [thread:$0]  %s546, 128, %s548, [#allocation10]
    $region37: #{tpu_custom_call.1} parent=1 // pred_fallthru
      _
    // Predicated region
    $region38: #{tpu_custom_call.1} parent=1 // pred_check
      _
    $region39: #{tpu_custom_call.1} parent=1 // pred_check_branch
      %552 = sbr.rel (0) target = $region41
    $region40: #{tpu_custom_call.1} parent=1 // pred_region
      %554 = vsyncadd [#allocation10], 0
      %s556 = sshll.u32 [#allocation11], 4
      %s557 = int_to_ptr.vmem [resolvable:$true] %s556
      %s558 = sshll.u32 %s6, 4
      %s559 = int_to_ptr.hbm [resolvable:$true] %s558
      %561 = dma.vmem_to_hbm [thread:$0]  %s557, 16, %s559, [#allocation10]
    $region41: #{tpu_custom_call.1} parent=1 // pred_fallthru
      _
    // Predicated region
    $region42: #{tpu_custom_call.1} parent=1 // pred_check
      _
    $region43: #{tpu_custom_call.1} parent=1 // pred_check_branch
      %563 = sbr.rel (0) target = $region45
    $region44: #{tpu_custom_call.1} parent=1 // pred_region
      %565 = dma.done [#allocation4], 128
    $region45: #{tpu_custom_call.1} parent=1 // pred_fallthru
      _
    // Predicated region
    $region46: #{tpu_custom_call.1} parent=1 // pred_check
      _
    $region47: #{tpu_custom_call.1} parent=1 // pred_check_branch
      %567 = sbr.rel (0) target = $region49
    $region48: #{tpu_custom_call.1} parent=1 // pred_region
      %569 = dma.done [#allocation10], 128
    $region49: #{tpu_custom_call.1} parent=1 // pred_fallthru
      _
    // Predicated region
    $region50: #{tpu_custom_call.1} parent=1 // pred_check
      _
    $region51: #{tpu_custom_call.1} parent=1 // pred_check_branch
      %571 = sbr.rel (0) target = $region53
    $region52: #{tpu_custom_call.1} parent=1 // pred_region
      %573 = dma.done [#allocation10], 16
    $region53: #{tpu_custom_call.1} parent=1 // pred_fallthru
      _
    %574 = vsyncpa [#allocation3], 1
    %575 = vsyncpa [#allocation6], 1
    %576 = vsyncpa [#allocation4], 1
    %577 = vsyncpa [#allocation10], 1

</llo_original>
